<compile_context>
chip_gen: v7x
topology: tpu7x:2x2x1
jax: 0.10.0
libtpu: 0.0.40
codegen_flags: <defaults>
</compile_context>

<pallas_src>
import jax
import jax.numpy as jnp
from jax.experimental import pallas as pl
from jax.experimental.pallas import tpu as pltpu


def _self_attn_kernel(x_ref, w_ref, o_ref, p_ref, xt_ref):
    """Per-(batch, column-tile) body.

    x_ref : (1, C, N)   input slab (channels x flattened spatial), per batch
    w_ref : (2C, C)     stacked weights [A = Wf^T Wg ; Wh]
    o_ref : (1, C, TJ)  output column tile
    p_ref : (2C, N)     scratch cache: [A @ x ; Wh @ x]   (built at j == 0)
    xt_ref: (N, C)      scratch cache: x^T                (built at j == 0)
    """
    C = x_ref.shape[1]
    tj = o_ref.shape[2]
    j = pl.program_id(1)

    # Build the per-batch caches once; reused for every column tile of this batch.
    @pl.when(j == 0)
    def _():
        x = x_ref[0]                                               # (C, N)
        p_ref[...] = jnp.dot(w_ref[...], x,
                             preferred_element_type=jnp.float32)   # (2C, N)
        xt_ref[...] = x.T                                          # (N, C)

    col = j * tj
    if tj % 128 == 0:
        col = pl.multiple_of(col, 128)

    ax = p_ref[0:C, pl.ds(col, tj)]          # (C, TJ)  == A @ x[:, cols]
    h = p_ref[C:2 * C, :]                    # (C, N)   == Wh @ x

    # sim[:, cols] = x^T (A x[:, cols])  -> (N, TJ); contraction over C on MXU.
    sim = jnp.dot(xt_ref[...], ax, preferred_element_type=jnp.float32)

    # Softmax over rows (torch softmax(dim=1) on the (N, N) similarity matrix);
    # reduction over the sublane axis as recommended.
    m = jnp.max(sim, axis=0, keepdims=True)            # (1, TJ)
    e = jnp.exp(sim - m)                               # (N, TJ)
    denom = jnp.sum(e, axis=0, keepdims=True)          # (1, TJ)

    # Deferred normalization: o[:, cols] = (h @ e) * (1 / denom)
    # -> TJ divides + C*TJ multiplies instead of N*TJ divides on beta.
    o_un = jnp.dot(h, e, preferred_element_type=jnp.float32)       # (C, TJ)
    o_ref[0] = (o_un * (1.0 / denom)).astype(o_ref.dtype)


def image_self_attention(x, wf, wg, wh, *, col_tile=256):
    """SAGAN image self-attention forward.

    x : (B, C, H, W) float32 ; wf, wg : (C//8, C) ; wh : (C, C).
    Returns o of shape (B, C, H*W) — same as the PyTorch module.
    """
    B, C, H, W = x.shape
    N = H * W
    x3 = x.reshape(B, C, N)

    # sim = (Wf x)^T (Wg x) = x^T (Wf^T Wg) x : fold Wf/Wg into A, stack with Wh.
    a = jnp.dot(wf.T, wg)                        # (C, C)
    w = jnp.concatenate([a, wh], axis=0)         # (2C, C)

    # Column-tile size for the softmax: multiple of 128 lanes, or the full N.
    if N % col_tile == 0:
        tj = col_tile
    elif N % 128 == 0:
        tj = 128
    else:
        tj = N
    n_col = N // tj

    return pl.pallas_call(
        _self_attn_kernel,
        out_shape=jax.ShapeDtypeStruct((B, C, N), x.dtype),
        grid=(B, n_col),
        in_specs=[
            pl.BlockSpec((1, C, N), lambda b, j: (b, 0, 0)),    # per-batch x slab
            pl.BlockSpec((2 * C, C), lambda b, j: (0, 0)),      # stacked [A; Wh]
        ],
        out_specs=pl.BlockSpec((1, C, tj), lambda b, j: (b, 0, j)),
        scratch_shapes=[
            pltpu.VMEM((2 * C, N), jnp.float32),   # P = [A@x ; Wh@x]
            pltpu.VMEM((N, C), jnp.float32),       # x^T
        ],
        compiler_params=pltpu.CompilerParams(
            dimension_semantics=("parallel", "arbitrary")),
    )(x3, w)


def _reference(x, wf, wg, wh):
    # Direct transcription of the PyTorch forward (f/g/h projections + softmax dim=1).
    B, C, H, W = x.shape
    N = H * W
    x3 = x.reshape(B, C, N)
    f = jnp.einsum('ic,bcn->bin', wf, x3)
    g = jnp.einsum('ic,bcn->bin', wg, x3)
    h = jnp.einsum('oc,bcn->bon', wh, x3)
    sim = jnp.einsum('bki,bkj->bij', f, g)          # (B, N, N)
    beta = jax.nn.softmax(sim, axis=1)              # softmax over dim=1
    return jnp.einsum('bci,bij->bcj', h, beta)      # (B, C, N)


if __name__ == "__main__":
    key = jax.random.PRNGKey(0)
    B, C, H, W = 2, 32, 16, 16          # planes=32 -> inner = planes // 8 = 4
    inner = C // 8

    kx, kf, kg, kh = jax.random.split(key, 4)
    x = jax.random.normal(kx, (B, C, H, W), dtype=jnp.float32)
    # deterministic weight init (kernel_size=1 conv weights, squeezed last dim)
    wf = jax.random.normal(kf, (inner, C), dtype=jnp.float32) * (1.0 / C) ** 0.5
    wg = jax.random.normal(kg, (inner, C), dtype=jnp.float32) * (1.0 / C) ** 0.5
    wh = jax.random.normal(kh, (C, C), dtype=jnp.float32) * (1.0 / C) ** 0.5

    out = image_self_attention(x, wf, wg, wh)
    out = jax.block_until_ready(out)

    ref = _reference(x, wf, wg, wh)
    assert out.shape == (B, C, H * W)
    assert jnp.allclose(out, ref, atol=1e-3, rtol=1e-3), "mismatch vs reference"

    print("KERNEL_OK")
</pallas_src>

<mosaic_0001>
module attributes {stable_mosaic.version = 11 : i64} {
  func.func @_self_attn_kernel(%arg0: i32, %arg1: i32, %arg2: memref<1x32x256xf32, #tpu.memory_space<vmem>>, %arg3: memref<64x32xf32, #tpu.memory_space<vmem>>, %arg4: memref<1x32x256xf32, #tpu.memory_space<vmem>>, %arg5: memref<64x256xf32, #tpu.memory_space<vmem>>, %arg6: memref<256x32xf32, #tpu.memory_space<vmem>>) attributes {dimension_semantics = [#tpu.dimension_semantics<parallel>, #tpu.dimension_semantics<arbitrary>], iteration_bounds = array<i64: 2, 1>, scalar_prefetch = 0 : i64, scratch_operands = 2 : i64, tpu.core_type = #tpu.core_type<tc>, window_params = [{transform_indices = @transform_0, window_bounds = array<i64: 1, 32, 256>}, {pipeline_mode = #tpu.pipeline_mode<synchronous>, transform_indices = @transform_1, window_bounds = array<i64: 64, 32>}, {transform_indices = @transform_2, window_bounds = array<i64: 1, 32, 256>}]} {
    %c0_i32 = arith.constant 0 : i32
    %0 = arith.cmpi eq, %arg1, %c0_i32 : i32
    %1 = arith.extui %0 : i1 to i32
    %c0_i32_0 = arith.constant 0 : i32
    %2 = arith.cmpi ne, %1, %c0_i32_0 : i32
    scf.if %2 {
      %c0_11 = arith.constant 0 : index
      %c0_12 = arith.constant 0 : index
      %c0_13 = arith.constant 0 : index
      %25 = vector.load %arg2[%c0_11, %c0_12, %c0_13] : memref<1x32x256xf32, #tpu.memory_space<vmem>>, vector<1x32x256xf32>
      %26 = vector.shape_cast %25 : vector<1x32x256xf32> to vector<32x256xf32>
      %c0_14 = arith.constant 0 : index
      %c0_15 = arith.constant 0 : index
      %27 = vector.load %arg3[%c0_14, %c0_15] : memref<64x32xf32, #tpu.memory_space<vmem>>, vector<64x32xf32>
      %cst_16 = arith.constant dense<0.000000e+00> : vector<64x256xf32>
      %28 = tpu.matmul %27, %26, %cst_16 {dimension_numbers = #tpu.dot_dimension_numbers<[1], [0], [0], [1], [0, 0, 1, 1], [], []>} : vector<64x32xf32>, vector<32x256xf32>, vector<64x256xf32> -> vector<64x256xf32>
      %c0_17 = arith.constant 0 : index
      %c0_18 = arith.constant 0 : index
      %29 = vector.load %arg5[%c0_17, %c0_18] : memref<64x256xf32, #tpu.memory_space<vmem>>, vector<64x256xf32>
      tpu.vector_store %arg5[%c0_17, %c0_18], %28 {strides = array<i32>} : memref<64x256xf32, #tpu.memory_space<vmem>>, vector<64x256xf32>,
      %30 = tpu.transpose %26, [1, 0] : vector<32x256xf32> -> vector<256x32xf32>
      %c0_19 = arith.constant 0 : index
      %c0_20 = arith.constant 0 : index
      %31 = vector.load %arg6[%c0_19, %c0_20] : memref<256x32xf32, #tpu.memory_space<vmem>>, vector<256x32xf32>
      tpu.vector_store %arg6[%c0_19, %c0_20], %30 {strides = array<i32>} : memref<256x32xf32, #tpu.memory_space<vmem>>, vector<256x32xf32>,
    } else {
    }
    %c256_i32 = arith.constant 256 : i32
    %3 = arith.muli %arg1, %c256_i32 : i32
    %4 = tpu.assume_multiple %3, 128 : i32
    %c0 = arith.constant 0 : index
    %5 = arith.index_cast %4 : i32 to index
    %6 = vector.load %arg5[%c0, %5] : memref<64x256xf32, #tpu.memory_space<vmem>>, vector<32x256xf32>
    %c32 = arith.constant 32 : index
    %c0_1 = arith.constant 0 : index
    %7 = vector.load %arg5[%c32, %c0_1] : memref<64x256xf32, #tpu.memory_space<vmem>>, vector<32x256xf32>
    %c0_2 = arith.constant 0 : index
    %c0_3 = arith.constant 0 : index
    %8 = vector.load %arg6[%c0_2, %c0_3] : memref<256x32xf32, #tpu.memory_space<vmem>>, vector<256x32xf32>
    %cst = arith.constant dense<0.000000e+00> : vector<256x256xf32>
    %9 = tpu.matmul %8, %6, %cst {dimension_numbers = #tpu.dot_dimension_numbers<[1], [0], [0], [1], [0, 0, 1, 1], [], []>} : vector<256x32xf32>, vector<32x256xf32>, vector<256x256xf32> -> vector<256x256xf32>
    %cst_4 = arith.constant dense<0xFF800000> : vector<256xf32>
    %10 = vector.multi_reduction <maximumf>, %9, %cst_4 [0] : vector<256x256xf32> to vector<256xf32>
    %11 = vector.shape_cast %10 : vector<256xf32> to vector<1x256xf32>
    %12 = vector.broadcast %11 : vector<1x256xf32> to vector<256x256xf32>
    %13 = arith.subf %9, %12 : vector<256x256xf32>
    %14 = math.exp %13 : vector<256x256xf32>
    %cst_5 = arith.constant dense<0.000000e+00> : vector<256xf32>
    %15 = vector.multi_reduction <add>, %14, %cst_5 [0] : vector<256x256xf32> to vector<256xf32>
    %16 = vector.shape_cast %15 : vector<256xf32> to vector<1x256xf32>
    %cst_6 = arith.constant dense<0.000000e+00> : vector<32x256xf32>
    %17 = tpu.matmul %7, %14, %cst_6 {dimension_numbers = #tpu.dot_dimension_numbers<[1], [0], [0], [1], [0, 0, 1, 1], [], []>} : vector<32x256xf32>, vector<256x256xf32>, vector<32x256xf32> -> vector<32x256xf32>
    %cst_7 = arith.constant 1.000000e+00 : f32
    %18 = vector.broadcast %cst_7 : f32 to vector<1x256xf32>
    %19 = arith.divf %18, %16 : vector<1x256xf32>
    %20 = vector.broadcast %19 : vector<1x256xf32> to vector<32x256xf32>
    %21 = arith.mulf %17, %20 : vector<32x256xf32>
    %c0_8 = arith.constant 0 : index
    %c0_9 = arith.constant 0 : index
    %c0_10 = arith.constant 0 : index
    %22 = vector.load %arg4[%c0_8, %c0_9, %c0_10] : memref<1x32x256xf32, #tpu.memory_space<vmem>>, vector<1x32x256xf32>
    %23 = vector.shape_cast %22 : vector<1x32x256xf32> to vector<32x256xf32>
    %24 = vector.shape_cast %21 : vector<32x256xf32> to vector<1x32x256xf32>
    tpu.vector_store %arg4[%c0_8, %c0_9, %c0_10], %24 {strides = array<i32>} : memref<1x32x256xf32, #tpu.memory_space<vmem>>, vector<1x32x256xf32>,
    return
  }
  func.func @transform_0(%arg0: i32, %arg1: i32) -> (i32, i32, i32) {
    %c0_i32 = arith.constant 0 : i32
    %c0_i32_0 = arith.constant 0 : i32
    %c0_i32_1 = arith.constant 0 : i32
    return %arg0, %c0_i32, %c0_i32_0 : i32, i32, i32
  }
  func.func @transform_1(%arg0: i32, %arg1: i32) -> (i32, i32) {
    %c0_i32 = arith.constant 0 : i32
    %c0_i32_0 = arith.constant 0 : i32
    %c0_i32_1 = arith.constant 0 : i32
    return %c0_i32, %c0_i32_0 : i32, i32
  }
  func.func @transform_2(%arg0: i32, %arg1: i32) -> (i32, i32, i32) {
    %c0_i32 = arith.constant 0 : i32
    %c0_i32_0 = arith.constant 0 : i32
    return %arg0, %c0_i32, %arg1 : i32, i32, i32
  }
}

</mosaic_0001>

<llo_original>
// kernel: tpu_custom_call.1
$region0: #{tpu_custom_call.1}
  #allocation0 [shape = 'u32[]', space=smem, size = 0x4, offset = 0x4, fixed_abs, tag = 'smem constant byte address 0x4 - core index']
  #allocation1 [shape = 'u32[144,128]{1,0:T(1,128)}', space=vmem, size = 0x12000, scoped, tag = 'internal scratch']
  #allocation2 [shape = 'f32[64,256]{1,0:T(8,128)}', space=vmem, size = 0x10000, scoped, tag = 'scratch operand']
  #allocation3 [shape = 'f32[256,32]{1,0:T(8,128)}', space=vmem, size = 0x20000, scoped, tag = 'scratch operand']
  %s0 = inlined_call_operand.hbm [shape: f32[2,32,256], index: 0, kind: input, shape index: {}]
  %s1 = inlined_call_operand.vmem [shape: f32[64,32], index: 1, kind: input, shape index: {}]
  %s2 = inlined_call_operand.hbm [shape: f32[2,32,256], index: 2, kind: output, shape index: {}]
  %s3 = sld [smem:[#allocation0]]
  $region49: #{tpu_custom_call.1} parent=0
    _
  %s5 = ssub.s32 1, %s3
  %s6 = scalar_select 0, %s5, %s3
  $region1: #{tpu_custom_call.1} parent=0
    #allocation4 [shape = 'u8[65536]{0}', space=vmem, size = 0x10000, scoped, tag = 'input window, operand 0']
    #allocation5 [shape = 's32[2]{0}', space=sflag, size = 0x8, scoped, tag = 'scoped memory for tpu_custom_call.1']
    #allocation6 [shape = 's32[2]{0}', space=sflag, size = 0x8, scoped, tag = 'scoped memory for tpu_custom_call.1']
    #allocation7 [shape = 'u8[65536]{0}', space=vmem, size = 0x10000, scoped, tag = 'output window, operand 0']
    %7 = vsyncpa [#allocation5], 0
    %s8 = scalar_lea.sflag [#allocation5], 1
    %9 = vsyncpa %s8, 0
    %10 = vsyncpa [#allocation6], 0
    %s11 = scalar_lea.sflag [#allocation6], 1
    %12 = vsyncpa %s11, 0
    loop: start=0, step=1, limit=4
    $region2: #{tpu_custom_call.1} parent=1 // loop_pre_header
      _
    $region3: #{tpu_custom_call.1} parent=1 // loop_header
      %s14 = sphi 0, %s18
      %p15 = scmp.ge.s32.totalorder %s14, 4
      %s21 = sphi 0, %s33
      %s22 = sphi 0, %s29
      %s23 = sphi 0, %s21
      %s24 = sphi 0, %s22
      %s25 = sphi 0, %s23
      %s26 = sphi 0, %s24
      %s36 = sphi 0, %s38
      %s39 = sphi 0, %s36
      %s40 = sphi 0, %s39
      %s56 = sphi 0, %s40
      %s60 = sphi 0, %s60
      %s62 = sphi 0, %s60
      %s63 = sphi 0, %s62
      %s77 = sphi 0, %s63
      %s85 = sphi 0, %s87
      %s88 = sphi 0, %s85
      %s89 = sphi 0, %s88
      %s105 = sphi 0, %s89
    $region4: #{tpu_custom_call.1} parent=1 // loop_header_branch
      %17 = sbr.rel (%p15) target = $region8
    $region5: #{tpu_custom_call.1} parent=1 // loop_body
      %s19 = ssub.s32 %s14, 1
      %s20 = ssub.s32 %s14, 2
      %s27 = sadd.s32 1, %s22
      %p28 = scmp.ge.s32.totalorder %s27, 1
      %s29 = scalar_select %p28, 0, %s27
      %s30 = sadd.s32 1, %s21
      %s31 = scalar_select %p28, %s30, %s21
      %p32 = scmp.ge.s32.totalorder %s31, 2
      %s33 = scalar_select %p32, 0, %s31
      %s34 = ssub.s32 %s21, %s33
      %p35 = scmp.eq.s32.totalorder %s34, 0
      %s37 = sadd.s32 %s36, 1
      %s38 = scalar_select %p35, %s36, %s37
      %p41 = pneg %p35
      %p42 = scmp.eq.s32.totalorder %s14, 1
      %p43 = por %p41, %p42
      %p44 = scmp.ne.s32.totalorder %s36, %s39
      %p45 = scmp.eq.s32.totalorder %s14, 0
      %p46 = por %p44, %p45
      %p47 = scmp.ne.s32.totalorder %s36, %s39
      %p48 = scmp.eq.s32.totalorder %s19, 1
      %p49 = por %p47, %p48
      %p50 = scmp.ne.s32.totalorder %s39, %s40
      %p51 = scmp.eq.s32.totalorder %s19, 0
      %p52 = por %p50, %p51
      %p53 = scmp.ne.s32.totalorder %s39, %s40
      %p54 = scmp.eq.s32.totalorder %s20, 1
      %p55 = por %p53, %p54
      %p57 = scmp.ne.s32.totalorder %s40, %s56
      %p58 = scmp.eq.s32.totalorder %s20, 0
      %p59 = por %p57, %p58
      %s61 = sadd.s32 %s60, 1
      %p64 = scmp.eq.s32.totalorder %s14, 1
      %p65 = scmp.ne.s32.totalorder %s60, %s62
      %p66 = scmp.eq.s32.totalorder %s14, 0
      %p67 = por %p65, %p66
      %p68 = scmp.ne.s32.totalorder %s60, %s62
      %p69 = scmp.eq.s32.totalorder %s19, 1
      %p70 = por %p68, %p69
      %p71 = scmp.ne.s32.totalorder %s62, %s63
      %p72 = scmp.eq.s32.totalorder %s19, 0
      %p73 = por %p71, %p72
      %p74 = scmp.ne.s32.totalorder %s62, %s63
      %p75 = scmp.eq.s32.totalorder %s20, 1
      %p76 = por %p74, %p75
      %p78 = scmp.ne.s32.totalorder %s63, %s77
      %p79 = scmp.eq.s32.totalorder %s20, 0
      %p80 = por %p78, %p79
      %s81 = ssub.s32 %s21, %s33
      %s82 = ssub.s32 %s22, %s29
      %s83 = sor.u32 %s81, %s82
      %p84 = scmp.eq.s32.totalorder %s83, 0
      %s86 = sadd.s32 %s85, 1
      %s87 = scalar_select %p84, %s85, %s86
      %p90 = pneg %p84
      %p91 = scmp.eq.s32.totalorder %s14, 1
      %p92 = por %p90, %p91
      %p93 = scmp.ne.s32.totalorder %s85, %s88
      %p94 = scmp.eq.s32.totalorder %s14, 0
      %p95 = por %p93, %p94
      %p96 = scmp.ne.s32.totalorder %s85, %s88
      %p97 = scmp.eq.s32.totalorder %s19, 1
      %p98 = por %p96, %p97
      %p99 = scmp.ne.s32.totalorder %s88, %s89
      %p100 = scmp.eq.s32.totalorder %s19, 0
      %p101 = por %p99, %p100
      %p102 = scmp.ne.s32.totalorder %s88, %s89
      %p103 = scmp.eq.s32.totalorder %s20, 1
      %p104 = por %p102, %p103
      %p106 = scmp.ne.s32.totalorder %s89, %s105
      %p107 = scmp.eq.s32.totalorder %s20, 0
      %p108 = por %p106, %p107
      %p109 = scmp.le.s32.totalorder 1, %s14
      %p110 = scmp.lt.s32.totalorder %s14, 3
      %p111 = pnand %p109, %p110
      %p112 = pneg %p111
      // Predicated region
      $region9: #{tpu_custom_call.1} parent=5 // pred_check
        _
      $region10: #{tpu_custom_call.1} parent=5 // pred_check_branch
        %114 = sbr.rel (%p111) target = $region12
      $region11: #{tpu_custom_call.1} parent=5 // pred_region
        %s115 = ssub.s32 %s14, 1
        // Predicated region
        $region13: #{tpu_custom_call.1} parent=11 // pred_check
          %p116 = pneg %p73
        $region14: #{tpu_custom_call.1} parent=11 // pred_check_branch
          %118 = sbr.rel (%p116) target = $region16
        $region15: #{tpu_custom_call.1} parent=11 // pred_region
          _
        $region16: #{tpu_custom_call.1} parent=11 // pred_fallthru
          _
      $region12: #{tpu_custom_call.1} parent=5 // pred_fallthru
        _
      %p119 = scmp.lt.s32.totalorder %s14, 2
      // Predicated region
      $region17: #{tpu_custom_call.1} parent=5 // pred_check
        %p120 = pneg %p119
      $region18: #{tpu_custom_call.1} parent=5 // pred_check_branch
        %122 = sbr.rel (%p120) target = $region20
      $region19: #{tpu_custom_call.1} parent=5 // pred_region
        // Predicated region
        $region21: #{tpu_custom_call.1} parent=19 // pred_check
          %p123 = pneg %p46
        $region22: #{tpu_custom_call.1} parent=19 // pred_check_branch
          %125 = sbr.rel (%p123) target = $region24
        $region23: #{tpu_custom_call.1} parent=19 // pred_region
          %s126 = sand.u32 %s36, 1
          %s127 = scalar_lea.sflag [#allocation5], %s126
          %s128 = sand.u32 %s36, 1
          %s129 = smul.addr %s128, 64
          %s130 = scalar_lea.vmem [#allocation4], %s129
          %s132 = ssub.s32 1024, 1024
          %133 = vsyncadd %s127, %s132
          %s134 = smul.addr %s21, 8
          %s135 = smul.addr %s134, 128
          %s136 = scalar_lea.hbm %s0, %s135
          %s137 = sshll.u32 %s130, 4
          %s138 = int_to_ptr.vmem [resolvable:$true] %s137
          %143 = dma.hbm_to_vmem [thread:$0]  %s136, 1024, %s138, %s127, 256, 256, 16
        $region24: #{tpu_custom_call.1} parent=19 // pred_fallthru
          _
      $region20: #{tpu_custom_call.1} parent=5 // pred_fallthru
        _
      %p144 = scmp.le.s32.totalorder 1, %s14
      %p145 = scmp.lt.s32.totalorder %s14, 3
      %p146 = pnand %p144, %p145
      %p147 = pneg %p146
      // Predicated region
      $region25: #{tpu_custom_call.1} parent=5 // pred_check
        _
      $region26: #{tpu_custom_call.1} parent=5 // pred_check_branch
        %149 = sbr.rel (%p146) target = $region28
      $region27: #{tpu_custom_call.1} parent=5 // pred_region
        %s150 = ssub.s32 %s14, 1
        %s151 = sand.u32 %s39, 1
        %s152 = scalar_lea.sflag [#allocation5], %s151
        %s153 = sand.u32 %s39, 1
        %s154 = smul.addr %s153, 64
        %s155 = scalar_lea.vmem [#allocation4], %s154
        // Predicated region
        $region29: #{tpu_custom_call.1} parent=27 // pred_check
          %p156 = pneg %p52
        $region30: #{tpu_custom_call.1} parent=27 // pred_check_branch
          %158 = sbr.rel (%p156) target = $region32
        $region31: #{tpu_custom_call.1} parent=27 // pred_region
          %159 = dma.done %s152, 1024
        $region32: #{tpu_custom_call.1} parent=27 // pred_fallthru
          _
        %s160 = sand.u32 %s39, 1
        %s161 = scalar_lea.sflag [#allocation5], %s160
        %s162 = sand.u32 %s39, 1
        %s163 = smul.addr %s162, 64
        %s164 = scalar_lea.vmem [#allocation4], %s163
        %p165 = pneg %p52
        %p166 = pneg %p49
        %p167 = pneg %p73
        %p168 = pneg %p70
        %p169 = pneg %p101
        %p170 = pneg %p98
        %s171 = sand.u32 %s88, 1
        %s172 = scalar_lea.sflag [#allocation6], %s171
        %s173 = sand.u32 %s88, 1
        %s174 = smul.addr %s173, 64
        %s175 = scalar_lea.vmem [#allocation7], %s174
        %s176 = smul.u32 2, %s24
        %p177 = scmp.eq.s32.totalorder %s24, 0
        // Predicated region
        $region33: #{tpu_custom_call.1} parent=27 // pred_check
          %p178 = pneg %p177
        $region34: #{tpu_custom_call.1} parent=27 // pred_check_branch
          %180 = sbr.rel (%p178) target = $region36
        $region35: #{tpu_custom_call.1} parent=27 // pred_region
          %v181 = vld [vmem:[%s155] sm:$0xff]
          %v182 = vld [vmem:[%s155 + $0x8] sm:$0xff]
          %v183 = vld [vmem:[%s155 + $0x10] sm:$0xff]
          %v184 = vld [vmem:[%s155 + $0x18] sm:$0xff]
          %v185 = vld [vmem:[%s155 + $0x20] sm:$0xff]
          %v186 = vld [vmem:[%s155 + $0x28] sm:$0xff]
          %v187 = vld [vmem:[%s155 + $0x30] sm:$0xff]
          %v188 = vld [vmem:[%s155 + $0x38] sm:$0xff]
          %v189 = vld [vmem:[%s1] sm:$0xff]
          %v190 = vld [vmem:[%s1 + $0x8] sm:$0xff]
          %v191 = vld [vmem:[%s1 + $0x10] sm:$0xff]
          %v192 = vld [vmem:[%s1 + $0x18] sm:$0xff]
          %v193 = vld [vmem:[%s1 + $0x20] sm:$0xff]
          %v194 = vld [vmem:[%s1 + $0x28] sm:$0xff]
          %v195 = vld [vmem:[%s1 + $0x30] sm:$0xff]
          %v196 = vld [vmem:[%s1 + $0x38] sm:$0xff]
          %vm197 = vcmask 261120
          %v199 = vsel %vm197, %v189, 0
          %v202 = vsel %vm197, %v190, 0
          %v205 = vsel %vm197, %v191, 0
          %v208 = vsel %vm197, %v192, 0
          %v211 = vsel %vm197, %v193, 0
          %v214 = vsel %vm197, %v194, 0
          %v217 = vsel %vm197, %v195, 0
          %v220 = vsel %vm197, %v196, 0
          %222 = vmatprep.subr.mxu0 %v182
          %223 = vmatpush1.msra.mxu0 %v181
          %224 = vmatprep.subr.mxu0 %v184
          %225 = vmatpush1.msra.mxu0 %v183
          %226 = vmatprep.subr.mxu0 %v186
          %227 = vmatpush1.msra.mxu0 %v185
          %228 = vmatprep.subr.mxu0 %v188
          %229 = vmatpush1.msra.mxu0 %v187
          %230 = vmatprep.subr.mxu0 0.0
          %231 = vmatpush1.msra.mxu0 0.0
          %232 = vmatprep.subr.mxu0 0.0
          %233 = vmatpush1.msra.mxu0 0.0
          %234 = vmatprep.subr.mxu0 0.0
          %235 = vmatpush1.msra.mxu0 0.0
          %236 = vmatprep.subr.mxu0 0.0
          %237 = vmatpush1.msra.mxu0 0.0
          %238 = vmatprep.subr.mxu0 0.0
          %239 = vmatpush1.msra.mxu0 0.0
          %240 = vmatprep.subr.mxu0 0.0
          %241 = vmatpush1.msra.mxu0 0.0
          %242 = vmatprep.subr.mxu0 0.0
          %243 = vmatpush1.msra.mxu0 0.0
          %244 = vmatprep.subr.mxu0 0.0
          %245 = vmatpush1.msra.mxu0 0.0
          %246 = vmatprep.subr.mxu0 0.0
          %247 = vmatpush1.msra.mxu0 0.0
          %248 = vmatprep.subr.mxu0 0.0
          %249 = vmatpush1.msra.mxu0 0.0
          %250 = vmatprep.subr.mxu0 0.0
          %251 = vmatpush1.msra.mxu0 0.0
          %252 = vmatprep.subr.mxu0 0.0
          %253 = vmatpush1.msra.mxu0 0.0
          %254 = vmatprep.subr.mxu0 0.0
          %255 = vmatpush1.msra.mxu0 0.0
          %256 = vmatprep.subr.mxu0 0.0
          %257 = vmatpush1.msra.mxu0 0.0
          %258 = vmatprep.subr.mxu0 0.0
          %259 = vmatpush1.msra.mxu0 0.0
          %260 = vmatprep.subr.mxu0 0.0
          %261 = vmatpush1.msra.mxu0 0.0
          %262 = vmatprep.subr.mxu0 0.0
          %263 = vmatpush1.msra.mxu0 0.0
          %264 = vmatprep.subr.mxu0 0.0
          %265 = vmatpush1.msra.mxu0 0.0
          %266 = vmatprep.subr.mxu0 0.0
          %267 = vmatpush1.msra.mxu0 0.0
          %268 = vmatprep.subr.mxu0 0.0
          %269 = vmatpush1.msra.mxu0 0.0
          %270 = vmatprep.subr.mxu0 0.0
          %271 = vmatpush1.msra.mxu0 0.0
          %272 = vmatprep.subr.mxu0 0.0
          %273 = vmatpush1.msra.mxu0 0.0
          %274 = vmatprep.subr.mxu0 0.0
          %275 = vmatpush1.msra.mxu0 0.0
          %276 = vmatprep.subr.mxu0 0.0
          %277 = vmatpush1.msra.mxu0 0.0
          %278 = vmatprep.subr.mxu0 0.0
          %279 = vmatpush1.msra.mxu0 0.0
          %280 = vmatprep.subr.mxu0 0.0
          %281 = vmatpush1.msra.mxu0 0.0
          %282 = vmatprep.subr.mxu0 0.0
          %283 = vmatpush1.msra.mxu0 0.0
          %284 = vmatprep.subr.mxu0 0.0
          %285 = vmatpush1.msra.mxu0 0.0
          %286 = vmatprep.mubr.f32.mxu0 0.0
          %287 = vmatmul.mubr.f32.gmra.mrb[0].mxu0 %v199
          %v288 = vpop.f32.mrb[0].mxu0
          %v289 = vadd.f32 0.0, %v288
          %v290 = vpop.f32.mrb[0].mxu0
          %v291 = vadd.f32 0.0, %v290
          %292 = vmatprep.mubr.f32.mxu0 0.0
          %293 = vmatmul.mubr.f32.gmra.mrb[0].mxu0 %v202
          %v294 = vpop.f32.mrb[0].mxu0
          %v295 = vadd.f32 0.0, %v294
          %v296 = vpop.f32.mrb[0].mxu0
          %v297 = vadd.f32 0.0, %v296
          %298 = vmatprep.mubr.f32.mxu0 0.0
          %299 = vmatmul.mubr.f32.gmra.mrb[0].mxu0 %v205
          %v300 = vpop.f32.mrb[0].mxu0
          %v301 = vadd.f32 0.0, %v300
          %v302 = vpop.f32.mrb[0].mxu0
          %v303 = vadd.f32 0.0, %v302
          %304 = vmatprep.mubr.f32.mxu0 0.0
          %305 = vmatmul.mubr.f32.gmra.mrb[0].mxu0 %v208
          %v306 = vpop.f32.mrb[0].mxu0
          %v307 = vadd.f32 0.0, %v306
          %v308 = vpop.f32.mrb[0].mxu0
          %v309 = vadd.f32 0.0, %v308
          %310 = vmatprep.mubr.f32.mxu0 0.0
          %311 = vmatmul.mubr.f32.gmra.mrb[0].mxu0 %v211
          %v312 = vpop.f32.mrb[0].mxu0
          %v313 = vadd.f32 0.0, %v312
          %v314 = vpop.f32.mrb[0].mxu0
          %v315 = vadd.f32 0.0, %v314
          %316 = vmatprep.mubr.f32.mxu0 0.0
          %317 = vmatmul.mubr.f32.gmra.mrb[0].mxu0 %v214
          %v318 = vpop.f32.mrb[0].mxu0
          %v319 = vadd.f32 0.0, %v318
          %v320 = vpop.f32.mrb[0].mxu0
          %v321 = vadd.f32 0.0, %v320
          %322 = vmatprep.mubr.f32.mxu0 0.0
          %323 = vmatmul.mubr.f32.gmra.mrb[0].mxu0 %v217
          %v324 = vpop.f32.mrb[0].mxu0
          %v325 = vadd.f32 0.0, %v324
          %v326 = vpop.f32.mrb[0].mxu0
          %v327 = vadd.f32 0.0, %v326
          %328 = vmatprep.mubr.f32.mxu0 0.0
          %329 = vmatmul.mubr.f32.gmra.mrb[0].mxu0 %v220
          %v330 = vpop.f32.mrb[0].mxu0
          %v331 = vadd.f32 0.0, %v330
          %v332 = vpop.f32.mrb[0].mxu0
          %v333 = vadd.f32 0.0, %v332
          %334 = vdwg.mxu0
          %335 = vst [vmem:[#allocation2] sm:$0xff] %v289
          %336 = vst [vmem:[#allocation2 + $0x8] sm:$0xff] %v291
          %337 = vst [vmem:[#allocation2 + $0x10] sm:$0xff] %v295
          %338 = vst [vmem:[#allocation2 + $0x18] sm:$0xff] %v297
          %339 = vst [vmem:[#allocation2 + $0x20] sm:$0xff] %v301
          %340 = vst [vmem:[#allocation2 + $0x28] sm:$0xff] %v303
          %341 = vst [vmem:[#allocation2 + $0x30] sm:$0xff] %v307
          %342 = vst [vmem:[#allocation2 + $0x38] sm:$0xff] %v309
          %343 = vst [vmem:[#allocation2 + $0x40] sm:$0xff] %v313
          %344 = vst [vmem:[#allocation2 + $0x48] sm:$0xff] %v315
          %345 = vst [vmem:[#allocation2 + $0x50] sm:$0xff] %v319
          %346 = vst [vmem:[#allocation2 + $0x58] sm:$0xff] %v321
          %347 = vst [vmem:[#allocation2 + $0x60] sm:$0xff] %v325
          %348 = vst [vmem:[#allocation2 + $0x68] sm:$0xff] %v327
          %349 = vst [vmem:[#allocation2 + $0x70] sm:$0xff] %v331
          %350 = vst [vmem:[#allocation2 + $0x78] sm:$0xff] %v333
          %351 = vxpose.xlu0.b32.start [1/16] %v181, 128
          %352 = vxpose.xlu0.b32.cont [2/16] %v183, 128
          %353 = vxpose.xlu0.b32.cont [3/16] %v185, 128
          %354 = vxpose.xlu0.b32.cont [4/16] %v187, 128
          %355 = vxpose.xlu0.b32.cont [5/16] 0.0, 128
          %356 = vxpose.xlu0.b32.cont [6/16] 0.0, 128
          %357 = vxpose.xlu0.b32.cont [7/16] 0.0, 128
          %358 = vxpose.xlu0.b32.cont [8/16] 0.0, 128
          %359 = vxpose.xlu0.b32.cont [9/16] 0.0, 128
          %360 = vxpose.xlu0.b32.cont [10/16] 0.0, 128
          %361 = vxpose.xlu0.b32.cont [11/16] 0.0, 128
          %362 = vxpose.xlu0.b32.cont [12/16] 0.0, 128
          %363 = vxpose.xlu0.b32.cont [13/16] 0.0, 128
          %364 = vxpose.xlu0.b32.cont [14/16] 0.0, 128
          %365 = vxpose.xlu0.b32.cont [15/16] 0.0, 128
          %366 = vxpose.xlu0.b32.end [16/16] 0.0, 128
          %v367 = vpop.trf.xlu0
          %v368 = vpop.trf.xlu0
          %v369 = vpop.trf.xlu0
          %v370 = vpop.trf.xlu0
          %v371 = vpop.trf.xlu0
          %v372 = vpop.trf.xlu0
          %v373 = vpop.trf.xlu0
          %v374 = vpop.trf.xlu0
          %v375 = vpop.trf.xlu0
          %v376 = vpop.trf.xlu0
          %v377 = vpop.trf.xlu0
          %v378 = vpop.trf.xlu0
          %v379 = vpop.trf.xlu0
          %v380 = vpop.trf.xlu0
          %v381 = vpop.trf.xlu0
          %v382 = vpop.trf.xlu0
          %383 = vxpose.xlu0.b32.start [1/16] %v182, 128
          %384 = vxpose.xlu0.b32.cont [2/16] %v184, 128
          %385 = vxpose.xlu0.b32.cont [3/16] %v186, 128
          %386 = vxpose.xlu0.b32.cont [4/16] %v188, 128
          %387 = vxpose.xlu0.b32.cont [5/16] 0.0, 128
          %388 = vxpose.xlu0.b32.cont [6/16] 0.0, 128
          %389 = vxpose.xlu0.b32.cont [7/16] 0.0, 128
          %390 = vxpose.xlu0.b32.cont [8/16] 0.0, 128
          %391 = vxpose.xlu0.b32.cont [9/16] 0.0, 128
          %392 = vxpose.xlu0.b32.cont [10/16] 0.0, 128
          %393 = vxpose.xlu0.b32.cont [11/16] 0.0, 128
          %394 = vxpose.xlu0.b32.cont [12/16] 0.0, 128
          %395 = vxpose.xlu0.b32.cont [13/16] 0.0, 128
          %396 = vxpose.xlu0.b32.cont [14/16] 0.0, 128
          %397 = vxpose.xlu0.b32.cont [15/16] 0.0, 128
          %398 = vxpose.xlu0.b32.end [16/16] 0.0, 128
          %v399 = vpop.trf.xlu0
          %v400 = vpop.trf.xlu0
          %v401 = vpop.trf.xlu0
          %v402 = vpop.trf.xlu0
          %v403 = vpop.trf.xlu0
          %v404 = vpop.trf.xlu0
          %v405 = vpop.trf.xlu0
          %v406 = vpop.trf.xlu0
          %v407 = vpop.trf.xlu0
          %v408 = vpop.trf.xlu0
          %v409 = vpop.trf.xlu0
          %v410 = vpop.trf.xlu0
          %v411 = vpop.trf.xlu0
          %v412 = vpop.trf.xlu0
          %v413 = vpop.trf.xlu0
          %v414 = vpop.trf.xlu0
          %415 = vst.msk [vmem:[#allocation3] sm:$0xff] %vm197, %v367
          %416 = vst.msk [vmem:[#allocation3 + $0x8] sm:$0xff] %vm197, %v368
          %417 = vst.msk [vmem:[#allocation3 + $0x10] sm:$0xff] %vm197, %v369
          %418 = vst.msk [vmem:[#allocation3 + $0x18] sm:$0xff] %vm197, %v370
          %419 = vst.msk [vmem:[#allocation3 + $0x20] sm:$0xff] %vm197, %v371
          %420 = vst.msk [vmem:[#allocation3 + $0x28] sm:$0xff] %vm197, %v372
          %421 = vst.msk [vmem:[#allocation3 + $0x30] sm:$0xff] %vm197, %v373
          %422 = vst.msk [vmem:[#allocation3 + $0x38] sm:$0xff] %vm197, %v374
          %423 = vst.msk [vmem:[#allocation3 + $0x40] sm:$0xff] %vm197, %v375
          %424 = vst.msk [vmem:[#allocation3 + $0x48] sm:$0xff] %vm197, %v376
          %425 = vst.msk [vmem:[#allocation3 + $0x50] sm:$0xff] %vm197, %v377
          %426 = vst.msk [vmem:[#allocation3 + $0x58] sm:$0xff] %vm197, %v378
          %427 = vst.msk [vmem:[#allocation3 + $0x60] sm:$0xff] %vm197, %v379
          %428 = vst.msk [vmem:[#allocation3 + $0x68] sm:$0xff] %vm197, %v380
          %429 = vst.msk [vmem:[#allocation3 + $0x70] sm:$0xff] %vm197, %v381
          %430 = vst.msk [vmem:[#allocation3 + $0x78] sm:$0xff] %vm197, %v382
          %431 = vst.msk [vmem:[#allocation3 + $0x80] sm:$0xff] %vm197, %v399
          %432 = vst.msk [vmem:[#allocation3 + $0x88] sm:$0xff] %vm197, %v400
          %433 = vst.msk [vmem:[#allocation3 + $0x90] sm:$0xff] %vm197, %v401
          %434 = vst.msk [vmem:[#allocation3 + $0x98] sm:$0xff] %vm197, %v402
          %435 = vst.msk [vmem:[#allocation3 + $0xa0] sm:$0xff] %vm197, %v403
          %436 = vst.msk [vmem:[#allocation3 + $0xa8] sm:$0xff] %vm197, %v404
          %437 = vst.msk [vmem:[#allocation3 + $0xb0] sm:$0xff] %vm197, %v405
          %438 = vst.msk [vmem:[#allocation3 + $0xb8] sm:$0xff] %vm197, %v406
          %439 = vst.msk [vmem:[#allocation3 + $0xc0] sm:$0xff] %vm197, %v407
          %440 = vst.msk [vmem:[#allocation3 + $0xc8] sm:$0xff] %vm197, %v408
          %441 = vst.msk [vmem:[#allocation3 + $0xd0] sm:$0xff] %vm197, %v409
          %442 = vst.msk [vmem:[#allocation3 + $0xd8] sm:$0xff] %vm197, %v410
          %443 = vst.msk [vmem:[#allocation3 + $0xe0] sm:$0xff] %vm197, %v411
          %444 = vst.msk [vmem:[#allocation3 + $0xe8] sm:$0xff] %vm197, %v412
          %445 = vst.msk [vmem:[#allocation3 + $0xf0] sm:$0xff] %vm197, %v413
          %446 = vst.msk [vmem:[#allocation3 + $0xf8] sm:$0xff] %vm197, %v414
        $region36: #{tpu_custom_call.1} parent=27 // pred_fallthru
          _
        %s447 = smul.u32 %s24, 256
        %s448 = sshra.s32 %s447, 7
        %s449 = sand.u32 %s447, 127
        %s450 = smul.addr %s448, 8
        %s451 = scalar_lea.vmem [#allocation2], %s450
        %v452 = vld [vmem:[%s451] sm:$0xff]
        %v453 = vld [vmem:[%s451 + $0x8] sm:$0xff]
        %v454 = vld [vmem:[%s451 + $0x10] sm:$0xff]
        %v455 = vld [vmem:[%s451 + $0x18] sm:$0xff]
        %v456 = vld [vmem:[%s451 + $0x20] sm:$0xff]
        %v457 = vld [vmem:[%s451 + $0x28] sm:$0xff]
        %v458 = vld [vmem:[%s451 + $0x30] sm:$0xff]
        %v459 = vld [vmem:[%s451 + $0x38] sm:$0xff]
        %v460 = vld [vmem:[#allocation2 + $0x40] sm:$0xff]
        %v461 = vld [vmem:[#allocation2 + $0x48] sm:$0xff]
        %v462 = vld [vmem:[#allocation2 + $0x50] sm:$0xff]
        %v463 = vld [vmem:[#allocation2 + $0x58] sm:$0xff]
        %v464 = vld [vmem:[#allocation2 + $0x60] sm:$0xff]
        %v465 = vld [vmem:[#allocation2 + $0x68] sm:$0xff]
        %v466 = vld [vmem:[#allocation2 + $0x70] sm:$0xff]
        %v467 = vld [vmem:[#allocation2 + $0x78] sm:$0xff]
        %v468 = vld [vmem:[#allocation3] sm:$0xff]
        %v469 = vld [vmem:[#allocation3 + $0x8] sm:$0xff]
        %v470 = vld [vmem:[#allocation3 + $0x10] sm:$0xff]
        %v471 = vld [vmem:[#allocation3 + $0x18] sm:$0xff]
        %v472 = vld [vmem:[#allocation3 + $0x20] sm:$0xff]
        %v473 = vld [vmem:[#allocation3 + $0x28] sm:$0xff]
        %v474 = vld [vmem:[#allocation3 + $0x30] sm:$0xff]
        %v475 = vld [vmem:[#allocation3 + $0x38] sm:$0xff]
        %v476 = vld [vmem:[#allocation3 + $0x40] sm:$0xff]
        %v477 = vld [vmem:[#allocation3 + $0x48] sm:$0xff]
        %v478 = vld [vmem:[#allocation3 + $0x50] sm:$0xff]
        %v479 = vld [vmem:[#allocation3 + $0x58] sm:$0xff]
        %v480 = vld [vmem:[#allocation3 + $0x60] sm:$0xff]
        %v481 = vld [vmem:[#allocation3 + $0x68] sm:$0xff]
        %v482 = vld [vmem:[#allocation3 + $0x70] sm:$0xff]
        %v483 = vld [vmem:[#allocation3 + $0x78] sm:$0xff]
        %v484 = vld [vmem:[#allocation3 + $0x80] sm:$0xff]
        %v485 = vld [vmem:[#allocation3 + $0x88] sm:$0xff]
        %v486 = vld [vmem:[#allocation3 + $0x90] sm:$0xff]
        %v487 = vld [vmem:[#allocation3 + $0x98] sm:$0xff]
        %v488 = vld [vmem:[#allocation3 + $0xa0] sm:$0xff]
        %v489 = vld [vmem:[#allocation3 + $0xa8] sm:$0xff]
        %v490 = vld [vmem:[#allocation3 + $0xb0] sm:$0xff]
        %v491 = vld [vmem:[#allocation3 + $0xb8] sm:$0xff]
        %v492 = vld [vmem:[#allocation3 + $0xc0] sm:$0xff]
        %v493 = vld [vmem:[#allocation3 + $0xc8] sm:$0xff]
        %v494 = vld [vmem:[#allocation3 + $0xd0] sm:$0xff]
        %v495 = vld [vmem:[#allocation3 + $0xd8] sm:$0xff]
        %v496 = vld [vmem:[#allocation3 + $0xe0] sm:$0xff]
        %v497 = vld [vmem:[#allocation3 + $0xe8] sm:$0xff]
        %v498 = vld [vmem:[#allocation3 + $0xf0] sm:$0xff]
        %v499 = vld [vmem:[#allocation3 + $0xf8] sm:$0xff]
        %vm500 = vcmask 261120
        %v502 = vsel %vm500, %v468, 0
        %v505 = vsel %vm500, %v469, 0
        %v508 = vsel %vm500, %v470, 0
        %v511 = vsel %vm500, %v471, 0
        %v514 = vsel %vm500, %v472, 0
        %v517 = vsel %vm500, %v473, 0
        %v520 = vsel %vm500, %v474, 0
        %v523 = vsel %vm500, %v475, 0
        %v526 = vsel %vm500, %v476, 0
        %v529 = vsel %vm500, %v477, 0
        %v532 = vsel %vm500, %v478, 0
        %v535 = vsel %vm500, %v479, 0
        %v538 = vsel %vm500, %v480, 0
        %v541 = vsel %vm500, %v481, 0
        %v544 = vsel %vm500, %v482, 0
        %v547 = vsel %vm500, %v483, 0
        %v550 = vsel %vm500, %v484, 0
        %v553 = vsel %vm500, %v485, 0
        %v556 = vsel %vm500, %v486, 0
        %v559 = vsel %vm500, %v487, 0
        %v562 = vsel %vm500, %v488, 0
        %v565 = vsel %vm500, %v489, 0
        %v568 = vsel %vm500, %v490, 0
        %v571 = vsel %vm500, %v491, 0
        %v574 = vsel %vm500, %v492, 0
        %v577 = vsel %vm500, %v493, 0
        %v580 = vsel %vm500, %v494, 0
        %v583 = vsel %vm500, %v495, 0
        %v586 = vsel %vm500, %v496, 0
        %v589 = vsel %vm500, %v497, 0
        %v592 = vsel %vm500, %v498, 0
        %v595 = vsel %vm500, %v499, 0
        %597 = vmatprep.subr.mxu0 %v453
        %598 = vmatpush1.msra.mxu0 %v452
        %599 = vmatprep.subr.mxu0 %v455
        %600 = vmatpush1.msra.mxu0 %v454
        %601 = vmatprep.subr.mxu0 %v457
        %602 = vmatpush1.msra.mxu0 %v456
        %603 = vmatprep.subr.mxu0 %v459
        %604 = vmatpush1.msra.mxu0 %v458
        %605 = vmatprep.subr.mxu0 0.0
        %606 = vmatpush1.msra.mxu0 0.0
        %607 = vmatprep.subr.mxu0 0.0
        %608 = vmatpush1.msra.mxu0 0.0
        %609 = vmatprep.subr.mxu0 0.0
        %610 = vmatpush1.msra.mxu0 0.0
        %611 = vmatprep.subr.mxu0 0.0
        %612 = vmatpush1.msra.mxu0 0.0
        %613 = vmatprep.subr.mxu0 0.0
        %614 = vmatpush1.msra.mxu0 0.0
        %615 = vmatprep.subr.mxu0 0.0
        %616 = vmatpush1.msra.mxu0 0.0
        %617 = vmatprep.subr.mxu0 0.0
        %618 = vmatpush1.msra.mxu0 0.0
        %619 = vmatprep.subr.mxu0 0.0
        %620 = vmatpush1.msra.mxu0 0.0
        %621 = vmatprep.subr.mxu0 0.0
        %622 = vmatpush1.msra.mxu0 0.0
        %623 = vmatprep.subr.mxu0 0.0
        %624 = vmatpush1.msra.mxu0 0.0
        %625 = vmatprep.subr.mxu0 0.0
        %626 = vmatpush1.msra.mxu0 0.0
        %627 = vmatprep.subr.mxu0 0.0
        %628 = vmatpush1.msra.mxu0 0.0
        %629 = vmatprep.subr.mxu0 0.0
        %630 = vmatpush1.msra.mxu0 0.0
        %631 = vmatprep.subr.mxu0 0.0
        %632 = vmatpush1.msra.mxu0 0.0
        %633 = vmatprep.subr.mxu0 0.0
        %634 = vmatpush1.msra.mxu0 0.0
        %635 = vmatprep.subr.mxu0 0.0
        %636 = vmatpush1.msra.mxu0 0.0
        %637 = vmatprep.subr.mxu0 0.0
        %638 = vmatpush1.msra.mxu0 0.0
        %639 = vmatprep.subr.mxu0 0.0
        %640 = vmatpush1.msra.mxu0 0.0
        %641 = vmatprep.subr.mxu0 0.0
        %642 = vmatpush1.msra.mxu0 0.0
        %643 = vmatprep.subr.mxu0 0.0
        %644 = vmatpush1.msra.mxu0 0.0
        %645 = vmatprep.subr.mxu0 0.0
        %646 = vmatpush1.msra.mxu0 0.0
        %647 = vmatprep.subr.mxu0 0.0
        %648 = vmatpush1.msra.mxu0 0.0
        %649 = vmatprep.subr.mxu0 0.0
        %650 = vmatpush1.msra.mxu0 0.0
        %651 = vmatprep.subr.mxu0 0.0
        %652 = vmatpush1.msra.mxu0 0.0
        %653 = vmatprep.subr.mxu0 0.0
        %654 = vmatpush1.msra.mxu0 0.0
        %655 = vmatprep.subr.mxu0 0.0
        %656 = vmatpush1.msra.mxu0 0.0
        %657 = vmatprep.subr.mxu0 0.0
        %658 = vmatpush1.msra.mxu0 0.0
        %659 = vmatprep.subr.mxu0 0.0
        %660 = vmatpush1.msra.mxu0 0.0
        %661 = vmatprep.mubr.f32.mxu0 0.0
        %662 = vmatmul.mubr.f32.gmra.mrb[0].mxu0 %v502
        %v663 = vpop.f32.mrb[0].mxu0
        %v664 = vadd.f32 0.0, %v663
        %v665 = vpop.f32.mrb[0].mxu0
        %v666 = vadd.f32 0.0, %v665
        %667 = vmatprep.mubr.f32.mxu0 0.0
        %668 = vmatmul.mubr.f32.gmra.mrb[0].mxu0 %v505
        %v669 = vpop.f32.mrb[0].mxu0
        %v670 = vadd.f32 0.0, %v669
        %v671 = vpop.f32.mrb[0].mxu0
        %v672 = vadd.f32 0.0, %v671
        %673 = vmatprep.mubr.f32.mxu0 0.0
        %674 = vmatmul.mubr.f32.gmra.mrb[0].mxu0 %v508
        %v675 = vpop.f32.mrb[0].mxu0
        %v676 = vadd.f32 0.0, %v675
        %v677 = vpop.f32.mrb[0].mxu0
        %v678 = vadd.f32 0.0, %v677
        %679 = vmatprep.mubr.f32.mxu0 0.0
        %680 = vmatmul.mubr.f32.gmra.mrb[0].mxu0 %v511
        %v681 = vpop.f32.mrb[0].mxu0
        %v682 = vadd.f32 0.0, %v681
        %v683 = vpop.f32.mrb[0].mxu0
        %v684 = vadd.f32 0.0, %v683
        %685 = vmatprep.mubr.f32.mxu0 0.0
        %686 = vmatmul.mubr.f32.gmra.mrb[0].mxu0 %v514
        %v687 = vpop.f32.mrb[0].mxu0
        %v688 = vadd.f32 0.0, %v687
        %v689 = vpop.f32.mrb[0].mxu0
        %v690 = vadd.f32 0.0, %v689
        %691 = vmatprep.mubr.f32.mxu0 0.0
        %692 = vmatmul.mubr.f32.gmra.mrb[0].mxu0 %v517
        %v693 = vpop.f32.mrb[0].mxu0
        %v694 = vadd.f32 0.0, %v693
        %v695 = vpop.f32.mrb[0].mxu0
        %v696 = vadd.f32 0.0, %v695
        %697 = vmatprep.mubr.f32.mxu0 0.0
        %698 = vmatmul.mubr.f32.gmra.mrb[0].mxu0 %v520
        %v699 = vpop.f32.mrb[0].mxu0
        %v700 = vadd.f32 0.0, %v699
        %v701 = vpop.f32.mrb[0].mxu0
        %v702 = vadd.f32 0.0, %v701
        %703 = vmatprep.mubr.f32.mxu0 0.0
        %704 = vmatmul.mubr.f32.gmra.mrb[0].mxu0 %v523
        %v705 = vpop.f32.mrb[0].mxu0
        %v706 = vadd.f32 0.0, %v705
        %v707 = vpop.f32.mrb[0].mxu0
        %v708 = vadd.f32 0.0, %v707
        %709 = vmatprep.mubr.f32.mxu0 0.0
        %710 = vmatmul.mubr.f32.gmra.mrb[0].mxu0 %v526
        %v711 = vpop.f32.mrb[0].mxu0
        %v712 = vadd.f32 0.0, %v711
        %v713 = vpop.f32.mrb[0].mxu0
        %v714 = vadd.f32 0.0, %v713
        %715 = vmatprep.mubr.f32.mxu0 0.0
        %716 = vmatmul.mubr.f32.gmra.mrb[0].mxu0 %v529
        %v717 = vpop.f32.mrb[0].mxu0
        %v718 = vadd.f32 0.0, %v717
        %v719 = vpop.f32.mrb[0].mxu0
        %v720 = vadd.f32 0.0, %v719
        %721 = vmatprep.mubr.f32.mxu0 0.0
        %722 = vmatmul.mubr.f32.gmra.mrb[0].mxu0 %v532
        %v723 = vpop.f32.mrb[0].mxu0
        %v724 = vadd.f32 0.0, %v723
        %v725 = vpop.f32.mrb[0].mxu0
        %v726 = vadd.f32 0.0, %v725
        %727 = vmatprep.mubr.f32.mxu0 0.0
        %728 = vmatmul.mubr.f32.gmra.mrb[0].mxu0 %v535
        %v729 = vpop.f32.mrb[0].mxu0
        %v730 = vadd.f32 0.0, %v729
        %v731 = vpop.f32.mrb[0].mxu0
        %v732 = vadd.f32 0.0, %v731
        %733 = vmatprep.mubr.f32.mxu0 0.0
        %734 = vmatmul.mubr.f32.gmra.mrb[0].mxu0 %v538
        %v735 = vpop.f32.mrb[0].mxu0
        %v736 = vadd.f32 0.0, %v735
        %v737 = vpop.f32.mrb[0].mxu0
        %v738 = vadd.f32 0.0, %v737
        %739 = vmatprep.mubr.f32.mxu0 0.0
        %740 = vmatmul.mubr.f32.gmra.mrb[0].mxu0 %v541
        %v741 = vpop.f32.mrb[0].mxu0
        %v742 = vadd.f32 0.0, %v741
        %v743 = vpop.f32.mrb[0].mxu0
        %v744 = vadd.f32 0.0, %v743
        %745 = vmatprep.mubr.f32.mxu0 0.0
        %746 = vmatmul.mubr.f32.gmra.mrb[0].mxu0 %v544
        %v747 = vpop.f32.mrb[0].mxu0
        %v748 = vadd.f32 0.0, %v747
        %v749 = vpop.f32.mrb[0].mxu0
        %v750 = vadd.f32 0.0, %v749
        %751 = vmatprep.mubr.f32.mxu0 0.0
        %752 = vmatmul.mubr.f32.gmra.mrb[0].mxu0 %v547
        %v753 = vpop.f32.mrb[0].mxu0
        %v754 = vadd.f32 0.0, %v753
        %v755 = vpop.f32.mrb[0].mxu0
        %v756 = vadd.f32 0.0, %v755
        %757 = vmatprep.mubr.f32.mxu0 0.0
        %758 = vmatmul.mubr.f32.gmra.mrb[0].mxu0 %v550
        %v759 = vpop.f32.mrb[0].mxu0
        %v760 = vadd.f32 0.0, %v759
        %v761 = vpop.f32.mrb[0].mxu0
        %v762 = vadd.f32 0.0, %v761
        %763 = vmatprep.mubr.f32.mxu0 0.0
        %764 = vmatmul.mubr.f32.gmra.mrb[0].mxu0 %v553
        %v765 = vpop.f32.mrb[0].mxu0
        %v766 = vadd.f32 0.0, %v765
        %v767 = vpop.f32.mrb[0].mxu0
        %v768 = vadd.f32 0.0, %v767
        %769 = vmatprep.mubr.f32.mxu0 0.0
        %770 = vmatmul.mubr.f32.gmra.mrb[0].mxu0 %v556
        %v771 = vpop.f32.mrb[0].mxu0
        %v772 = vadd.f32 0.0, %v771
        %v773 = vpop.f32.mrb[0].mxu0
        %v774 = vadd.f32 0.0, %v773
        %775 = vmatprep.mubr.f32.mxu0 0.0
        %776 = vmatmul.mubr.f32.gmra.mrb[0].mxu0 %v559
        %v777 = vpop.f32.mrb[0].mxu0
        %v778 = vadd.f32 0.0, %v777
        %v779 = vpop.f32.mrb[0].mxu0
        %v780 = vadd.f32 0.0, %v779
        %781 = vmatprep.mubr.f32.mxu0 0.0
        %782 = vmatmul.mubr.f32.gmra.mrb[0].mxu0 %v562
        %v783 = vpop.f32.mrb[0].mxu0
        %v784 = vadd.f32 0.0, %v783
        %v785 = vpop.f32.mrb[0].mxu0
        %v786 = vadd.f32 0.0, %v785
        %787 = vmatprep.mubr.f32.mxu0 0.0
        %788 = vmatmul.mubr.f32.gmra.mrb[0].mxu0 %v565
        %v789 = vpop.f32.mrb[0].mxu0
        %v790 = vadd.f32 0.0, %v789
        %v791 = vpop.f32.mrb[0].mxu0
        %v792 = vadd.f32 0.0, %v791
        %793 = vmatprep.mubr.f32.mxu0 0.0
        %794 = vmatmul.mubr.f32.gmra.mrb[0].mxu0 %v568
        %v795 = vpop.f32.mrb[0].mxu0
        %v796 = vadd.f32 0.0, %v795
        %v797 = vpop.f32.mrb[0].mxu0
        %v798 = vadd.f32 0.0, %v797
        %799 = vmatprep.mubr.f32.mxu0 0.0
        %800 = vmatmul.mubr.f32.gmra.mrb[0].mxu0 %v571
        %v801 = vpop.f32.mrb[0].mxu0
        %v802 = vadd.f32 0.0, %v801
        %v803 = vpop.f32.mrb[0].mxu0
        %v804 = vadd.f32 0.0, %v803
        %805 = vmatprep.mubr.f32.mxu0 0.0
        %806 = vmatmul.mubr.f32.gmra.mrb[0].mxu0 %v574
        %v807 = vpop.f32.mrb[0].mxu0
        %v808 = vadd.f32 0.0, %v807
        %v809 = vpop.f32.mrb[0].mxu0
        %v810 = vadd.f32 0.0, %v809
        %811 = vmatprep.mubr.f32.mxu0 0.0
        %812 = vmatmul.mubr.f32.gmra.mrb[0].mxu0 %v577
        %v813 = vpop.f32.mrb[0].mxu0
        %v814 = vadd.f32 0.0, %v813
        %v815 = vpop.f32.mrb[0].mxu0
        %v816 = vadd.f32 0.0, %v815
        %817 = vmatprep.mubr.f32.mxu0 0.0
        %818 = vmatmul.mubr.f32.gmra.mrb[0].mxu0 %v580
        %v819 = vpop.f32.mrb[0].mxu0
        %v820 = vadd.f32 0.0, %v819
        %v821 = vpop.f32.mrb[0].mxu0
        %v822 = vadd.f32 0.0, %v821
        %823 = vmatprep.mubr.f32.mxu0 0.0
        %824 = vmatmul.mubr.f32.gmra.mrb[0].mxu0 %v583
        %v825 = vpop.f32.mrb[0].mxu0
        %v826 = vadd.f32 0.0, %v825
        %v827 = vpop.f32.mrb[0].mxu0
        %v828 = vadd.f32 0.0, %v827
        %829 = vmatprep.mubr.f32.mxu0 0.0
        %830 = vmatmul.mubr.f32.gmra.mrb[0].mxu0 %v586
        %v831 = vpop.f32.mrb[0].mxu0
        %v832 = vadd.f32 0.0, %v831
        %v833 = vpop.f32.mrb[0].mxu0
        %v834 = vadd.f32 0.0, %v833
        %835 = vmatprep.mubr.f32.mxu0 0.0
        %836 = vmatmul.mubr.f32.gmra.mrb[0].mxu0 %v589
        %v837 = vpop.f32.mrb[0].mxu0
        %v838 = vadd.f32 0.0, %v837
        %v839 = vpop.f32.mrb[0].mxu0
        %v840 = vadd.f32 0.0, %v839
        %841 = vmatprep.mubr.f32.mxu0 0.0
        %842 = vmatmul.mubr.f32.gmra.mrb[0].mxu0 %v592
        %v843 = vpop.f32.mrb[0].mxu0
        %v844 = vadd.f32 0.0, %v843
        %v845 = vpop.f32.mrb[0].mxu0
        %v846 = vadd.f32 0.0, %v845
        %847 = vmatprep.mubr.f32.mxu0 0.0
        %848 = vmatmul.mubr.f32.gmra.mrb[0].mxu0 %v595
        %v849 = vpop.f32.mrb[0].mxu0
        %v850 = vadd.f32 0.0, %v849
        %v851 = vpop.f32.mrb[0].mxu0
        %v852 = vadd.f32 0.0, %v851
        %853 = vdwg.mxu0
        %v854 = vmax.f32 %v664, %v676
        %v855 = vmax.f32 %v670, %v682
        %v856 = vmax.f32 %v854, %v688
        %v857 = vmax.f32 %v855, %v694
        %v858 = vmax.f32 %v856, %v700
        %v859 = vmax.f32 %v857, %v706
        %v860 = vmax.f32 %v858, %v712
        %v861 = vmax.f32 %v859, %v718
        %v862 = vmax.f32 %v860, %v724
        %v863 = vmax.f32 %v861, %v730
        %v864 = vmax.f32 %v862, %v736
        %v865 = vmax.f32 %v863, %v742
        %v866 = vmax.f32 %v864, %v748
        %v867 = vmax.f32 %v865, %v754
        %v868 = vmax.f32 %v866, %v760
        %v869 = vmax.f32 %v867, %v766
        %v870 = vmax.f32 %v868, %v772
        %v871 = vmax.f32 %v869, %v778
        %v872 = vmax.f32 %v870, %v784
        %v873 = vmax.f32 %v871, %v790
        %v874 = vmax.f32 %v872, %v796
        %v875 = vmax.f32 %v873, %v802
        %v876 = vmax.f32 %v874, %v808
        %v877 = vmax.f32 %v875, %v814
        %v878 = vmax.f32 %v876, %v820
        %v879 = vmax.f32 %v877, %v826
        %v880 = vmax.f32 %v878, %v832
        %v881 = vmax.f32 %v879, %v838
        %v882 = vmax.f32 %v880, %v844
        %v883 = vmax.f32 %v881, %v850
        %v884 = vmax.f32 %v882, %v883
        %v885 = vrot.slane %v884, 4
        %v886 = vmax.f32 %v884, %v885
        %v887 = vrot.slane %v886, 2
        %v888 = vmax.f32 %v886, %v887
        %v889 = vrot.slane %v888, 1
        %v890 = vmax.f32 %v888, %v889
        %v891 = vmax.f32 %v666, %v678
        %v892 = vmax.f32 %v672, %v684
        %v893 = vmax.f32 %v891, %v690
        %v894 = vmax.f32 %v892, %v696
        %v895 = vmax.f32 %v893, %v702
        %v896 = vmax.f32 %v894, %v708
        %v897 = vmax.f32 %v895, %v714
        %v898 = vmax.f32 %v896, %v720
        %v899 = vmax.f32 %v897, %v726
        %v900 = vmax.f32 %v898, %v732
        %v901 = vmax.f32 %v899, %v738
        %v902 = vmax.f32 %v900, %v744
        %v903 = vmax.f32 %v901, %v750
        %v904 = vmax.f32 %v902, %v756
        %v905 = vmax.f32 %v903, %v762
        %v906 = vmax.f32 %v904, %v768
        %v907 = vmax.f32 %v905, %v774
        %v908 = vmax.f32 %v906, %v780
        %v909 = vmax.f32 %v907, %v786
        %v910 = vmax.f32 %v908, %v792
        %v911 = vmax.f32 %v909, %v798
        %v912 = vmax.f32 %v910, %v804
        %v913 = vmax.f32 %v911, %v810
        %v914 = vmax.f32 %v912, %v816
        %v915 = vmax.f32 %v913, %v822
        %v916 = vmax.f32 %v914, %v828
        %v917 = vmax.f32 %v915, %v834
        %v918 = vmax.f32 %v916, %v840
        %v919 = vmax.f32 %v917, %v846
        %v920 = vmax.f32 %v918, %v852
        %v921 = vmax.f32 %v919, %v920
        %v922 = vrot.slane %v921, 4
        %v923 = vmax.f32 %v921, %v922
        %v924 = vrot.slane %v923, 2
        %v925 = vmax.f32 %v923, %v924
        %v926 = vrot.slane %v925, 1
        %v927 = vmax.f32 %v925, %v926
        %v928 = vsub.f32 %v664, %v890
        %v929 = vsub.f32 %v666, %v927
        %v930 = vsub.f32 %v670, %v890
        %v931 = vsub.f32 %v672, %v927
        %v932 = vsub.f32 %v676, %v890
        %v933 = vsub.f32 %v678, %v927
        %v934 = vsub.f32 %v682, %v890
        %v935 = vsub.f32 %v684, %v927
        %v936 = vsub.f32 %v688, %v890
        %v937 = vsub.f32 %v690, %v927
        %v938 = vsub.f32 %v694, %v890
        %v939 = vsub.f32 %v696, %v927
        %v940 = vsub.f32 %v700, %v890
        %v941 = vsub.f32 %v702, %v927
        %v942 = vsub.f32 %v706, %v890
        %v943 = vsub.f32 %v708, %v927
        %v944 = vsub.f32 %v712, %v890
        %v945 = vsub.f32 %v714, %v927
        %v946 = vsub.f32 %v718, %v890
        %v947 = vsub.f32 %v720, %v927
        %v948 = vsub.f32 %v724, %v890
        %v949 = vsub.f32 %v726, %v927
        %v950 = vsub.f32 %v730, %v890
        %v951 = vsub.f32 %v732, %v927
        %v952 = vsub.f32 %v736, %v890
        %v953 = vsub.f32 %v738, %v927
        %v954 = vsub.f32 %v742, %v890
        %v955 = vsub.f32 %v744, %v927
        %v956 = vsub.f32 %v748, %v890
        %v957 = vsub.f32 %v750, %v927
        %v958 = vsub.f32 %v754, %v890
        %v959 = vsub.f32 %v756, %v927
        %v960 = vsub.f32 %v760, %v890
        %v961 = vsub.f32 %v762, %v927
        %v962 = vsub.f32 %v766, %v890
        %v963 = vsub.f32 %v768, %v927
        %v964 = vsub.f32 %v772, %v890
        %v965 = vsub.f32 %v774, %v927
        %v966 = vsub.f32 %v778, %v890
        %v967 = vsub.f32 %v780, %v927
        %v968 = vsub.f32 %v784, %v890
        %v969 = vsub.f32 %v786, %v927
        %v970 = vsub.f32 %v790, %v890
        %v971 = vsub.f32 %v792, %v927
        %v972 = vsub.f32 %v796, %v890
        %v973 = vsub.f32 %v798, %v927
        %v974 = vsub.f32 %v802, %v890
        %v975 = vsub.f32 %v804, %v927
        %v976 = vsub.f32 %v808, %v890
        %v977 = vsub.f32 %v810, %v927
        %v978 = vsub.f32 %v814, %v890
        %v979 = vsub.f32 %v816, %v927
        %v980 = vsub.f32 %v820, %v890
        %v981 = vsub.f32 %v822, %v927
        %v982 = vsub.f32 %v826, %v890
        %v983 = vsub.f32 %v828, %v927
        %v984 = vsub.f32 %v832, %v890
        %v985 = vsub.f32 %v834, %v927
        %v986 = vsub.f32 %v838, %v890
        %v987 = vsub.f32 %v840, %v927
        %v988 = vsub.f32 %v844, %v890
        %v989 = vsub.f32 %v846, %v927
        %v990 = vsub.f32 %v850, %v890
        %v991 = vsub.f32 %v852, %v927
        %v992 = vmul.f32 %v928, 1.442695
        %v993 = vpow.pop %v992
        %v994 = vmul.f32 %v929, 1.442695
        %v995 = vpow.pop %v994
        %v996 = vmul.f32 %v930, 1.442695
        %v997 = vpow.pop %v996
        %v998 = vmul.f32 %v931, 1.442695
        %v999 = vpow.pop %v998
        %v1000 = vmul.f32 %v932, 1.442695
        %v1001 = vpow.pop %v1000
        %v1002 = vmul.f32 %v933, 1.442695
        %v1003 = vpow.pop %v1002
        %v1004 = vmul.f32 %v934, 1.442695
        %v1005 = vpow.pop %v1004
        %v1006 = vmul.f32 %v935, 1.442695
        %v1007 = vpow.pop %v1006
        %v1008 = vmul.f32 %v936, 1.442695
        %v1009 = vpow.pop %v1008
        %v1010 = vmul.f32 %v937, 1.442695
        %v1011 = vpow.pop %v1010
        %v1012 = vmul.f32 %v938, 1.442695
        %v1013 = vpow.pop %v1012
        %v1014 = vmul.f32 %v939, 1.442695
        %v1015 = vpow.pop %v1014
        %v1016 = vmul.f32 %v940, 1.442695
        %v1017 = vpow.pop %v1016
        %v1018 = vmul.f32 %v941, 1.442695
        %v1019 = vpow.pop %v1018
        %v1020 = vmul.f32 %v942, 1.442695
        %v1021 = vpow.pop %v1020
        %v1022 = vmul.f32 %v943, 1.442695
        %v1023 = vpow.pop %v1022
        %v1024 = vmul.f32 %v944, 1.442695
        %v1025 = vpow.pop %v1024
        %v1026 = vmul.f32 %v945, 1.442695
        %v1027 = vpow.pop %v1026
        %v1028 = vmul.f32 %v946, 1.442695
        %v1029 = vpow.pop %v1028
        %v1030 = vmul.f32 %v947, 1.442695
        %v1031 = vpow.pop %v1030
        %v1032 = vmul.f32 %v948, 1.442695
        %v1033 = vpow.pop %v1032
        %v1034 = vmul.f32 %v949, 1.442695
        %v1035 = vpow.pop %v1034
        %v1036 = vmul.f32 %v950, 1.442695
        %v1037 = vpow.pop %v1036
        %v1038 = vmul.f32 %v951, 1.442695
        %v1039 = vpow.pop %v1038
        %v1040 = vmul.f32 %v952, 1.442695
        %v1041 = vpow.pop %v1040
        %v1042 = vmul.f32 %v953, 1.442695
        %v1043 = vpow.pop %v1042
        %v1044 = vmul.f32 %v954, 1.442695
        %v1045 = vpow.pop %v1044
        %v1046 = vmul.f32 %v955, 1.442695
        %v1047 = vpow.pop %v1046
        %v1048 = vmul.f32 %v956, 1.442695
        %v1049 = vpow.pop %v1048
        %v1050 = vmul.f32 %v957, 1.442695
        %v1051 = vpow.pop %v1050
        %v1052 = vmul.f32 %v958, 1.442695
        %v1053 = vpow.pop %v1052
        %v1054 = vmul.f32 %v959, 1.442695
        %v1055 = vpow.pop %v1054
        %v1056 = vmul.f32 %v960, 1.442695
        %v1057 = vpow.pop %v1056
        %v1058 = vmul.f32 %v961, 1.442695
        %v1059 = vpow.pop %v1058
        %v1060 = vmul.f32 %v962, 1.442695
        %v1061 = vpow.pop %v1060
        %v1062 = vmul.f32 %v963, 1.442695
        %v1063 = vpow.pop %v1062
        %v1064 = vmul.f32 %v964, 1.442695
        %v1065 = vpow.pop %v1064
        %v1066 = vmul.f32 %v965, 1.442695
        %v1067 = vpow.pop %v1066
        %v1068 = vmul.f32 %v966, 1.442695
        %v1069 = vpow.pop %v1068
        %v1070 = vmul.f32 %v967, 1.442695
        %v1071 = vpow.pop %v1070
        %v1072 = vmul.f32 %v968, 1.442695
        %v1073 = vpow.pop %v1072
        %v1074 = vmul.f32 %v969, 1.442695
        %v1075 = vpow.pop %v1074
        %v1076 = vmul.f32 %v970, 1.442695
        %v1077 = vpow.pop %v1076
        %v1078 = vmul.f32 %v971, 1.442695
        %v1079 = vpow.pop %v1078
        %v1080 = vmul.f32 %v972, 1.442695
        %v1081 = vpow.pop %v1080
        %v1082 = vmul.f32 %v973, 1.442695
        %v1083 = vpow.pop %v1082
        %v1084 = vmul.f32 %v974, 1.442695
        %v1085 = vpow.pop %v1084
        %v1086 = vmul.f32 %v975, 1.442695
        %v1087 = vpow.pop %v1086
        %v1088 = vmul.f32 %v976, 1.442695
        %v1089 = vpow.pop %v1088
        %v1090 = vmul.f32 %v977, 1.442695
        %v1091 = vpow.pop %v1090
        %v1092 = vmul.f32 %v978, 1.442695
        %v1093 = vpow.pop %v1092
        %v1094 = vmul.f32 %v979, 1.442695
        %v1095 = vpow.pop %v1094
        %v1096 = vmul.f32 %v980, 1.442695
        %v1097 = vpow.pop %v1096
        %v1098 = vmul.f32 %v981, 1.442695
        %v1099 = vpow.pop %v1098
        %v1100 = vmul.f32 %v982, 1.442695
        %v1101 = vpow.pop %v1100
        %v1102 = vmul.f32 %v983, 1.442695
        %v1103 = vpow.pop %v1102
        %v1104 = vmul.f32 %v984, 1.442695
        %v1105 = vpow.pop %v1104
        %v1106 = vmul.f32 %v985, 1.442695
        %v1107 = vpow.pop %v1106
        %v1108 = vmul.f32 %v986, 1.442695
        %v1109 = vpow.pop %v1108
        %v1110 = vmul.f32 %v987, 1.442695
        %v1111 = vpow.pop %v1110
        %v1112 = vmul.f32 %v988, 1.442695
        %v1113 = vpow.pop %v1112
        %v1114 = vmul.f32 %v989, 1.442695
        %v1115 = vpow.pop %v1114
        %v1116 = vmul.f32 %v990, 1.442695
        %v1117 = vpow.pop %v1116
        %v1118 = vmul.f32 %v991, 1.442695
        %v1119 = vpow.pop %v1118
        %v1120 = vadd.f32 %v993, %v997
        %v1121 = vadd.f32 %v1120, %v1001
        %v1122 = vadd.f32 %v1121, %v1005
        %v1123 = vadd.f32 %v1122, %v1009
        %v1124 = vadd.f32 %v1123, %v1013
        %v1125 = vadd.f32 %v1124, %v1017
        %v1126 = vadd.f32 %v1125, %v1021
        %v1127 = vadd.f32 %v1126, %v1025
        %v1128 = vadd.f32 %v1127, %v1029
        %v1129 = vadd.f32 %v1128, %v1033
        %v1130 = vadd.f32 %v1129, %v1037
        %v1131 = vadd.f32 %v1130, %v1041
        %v1132 = vadd.f32 %v1131, %v1045
        %v1133 = vadd.f32 %v1132, %v1049
        %v1134 = vadd.f32 %v1133, %v1053
        %v1135 = vadd.f32 %v1134, %v1057
        %v1136 = vadd.f32 %v1135, %v1061
        %v1137 = vadd.f32 %v1136, %v1065
        %v1138 = vadd.f32 %v1137, %v1069
        %v1139 = vadd.f32 %v1138, %v1073
        %v1140 = vadd.f32 %v1139, %v1077
        %v1141 = vadd.f32 %v1140, %v1081
        %v1142 = vadd.f32 %v1141, %v1085
        %v1143 = vadd.f32 %v1142, %v1089
        %v1144 = vadd.f32 %v1143, %v1093
        %v1145 = vadd.f32 %v1144, %v1097
        %v1146 = vadd.f32 %v1145, %v1101
        %v1147 = vadd.f32 %v1146, %v1105
        %v1148 = vadd.f32 %v1147, %v1109
        %v1149 = vadd.f32 %v1148, %v1113
        %v1150 = vadd.f32 %v1149, %v1117
        %v1151 = vrot.slane %v1150, 4
        %v1152 = vadd.f32 %v1150, %v1151
        %v1153 = vrot.slane %v1152, 2
        %v1154 = vadd.f32 %v1152, %v1153
        %v1155 = vrot.slane %v1154, 1
        %v1156 = vadd.f32 %v1154, %v1155
        %v1157 = vadd.f32 %v995, %v999
        %v1158 = vadd.f32 %v1157, %v1003
        %v1159 = vadd.f32 %v1158, %v1007
        %v1160 = vadd.f32 %v1159, %v1011
        %v1161 = vadd.f32 %v1160, %v1015
        %v1162 = vadd.f32 %v1161, %v1019
        %v1163 = vadd.f32 %v1162, %v1023
        %v1164 = vadd.f32 %v1163, %v1027
        %v1165 = vadd.f32 %v1164, %v1031
        %v1166 = vadd.f32 %v1165, %v1035
        %v1167 = vadd.f32 %v1166, %v1039
        %v1168 = vadd.f32 %v1167, %v1043
        %v1169 = vadd.f32 %v1168, %v1047
        %v1170 = vadd.f32 %v1169, %v1051
        %v1171 = vadd.f32 %v1170, %v1055
        %v1172 = vadd.f32 %v1171, %v1059
        %v1173 = vadd.f32 %v1172, %v1063
        %v1174 = vadd.f32 %v1173, %v1067
        %v1175 = vadd.f32 %v1174, %v1071
        %v1176 = vadd.f32 %v1175, %v1075
        %v1177 = vadd.f32 %v1176, %v1079
        %v1178 = vadd.f32 %v1177, %v1083
        %v1179 = vadd.f32 %v1178, %v1087
        %v1180 = vadd.f32 %v1179, %v1091
        %v1181 = vadd.f32 %v1180, %v1095
        %v1182 = vadd.f32 %v1181, %v1099
        %v1183 = vadd.f32 %v1182, %v1103
        %v1184 = vadd.f32 %v1183, %v1107
        %v1185 = vadd.f32 %v1184, %v1111
        %v1186 = vadd.f32 %v1185, %v1115
        %v1187 = vadd.f32 %v1186, %v1119
        %v1188 = vrot.slane %v1187, 4
        %v1189 = vadd.f32 %v1187, %v1188
        %v1190 = vrot.slane %v1189, 2
        %v1191 = vadd.f32 %v1189, %v1190
        %v1192 = vrot.slane %v1191, 1
        %v1193 = vadd.f32 %v1191, %v1192
        %1194 = vmatprep.subr.mxu0 %v995
        %1195 = vmatpush1.msra.mxu0 %v993
        %1196 = vmatprep.subr.mxu0 %v999
        %1197 = vmatpush1.msra.mxu0 %v997
        %1198 = vmatprep.subr.mxu0 %v1003
        %1199 = vmatpush1.msra.mxu0 %v1001
        %1200 = vmatprep.subr.mxu0 %v1007
        %1201 = vmatpush1.msra.mxu0 %v1005
        %1202 = vmatprep.subr.mxu0 %v1011
        %1203 = vmatpush1.msra.mxu0 %v1009
        %1204 = vmatprep.subr.mxu0 %v1015
        %1205 = vmatpush1.msra.mxu0 %v1013
        %1206 = vmatprep.subr.mxu0 %v1019
        %1207 = vmatpush1.msra.mxu0 %v1017
        %1208 = vmatprep.subr.mxu0 %v1023
        %1209 = vmatpush1.msra.mxu0 %v1021
        %1210 = vmatprep.subr.mxu0 %v1027
        %1211 = vmatpush1.msra.mxu0 %v1025
        %1212 = vmatprep.subr.mxu0 %v1031
        %1213 = vmatpush1.msra.mxu0 %v1029
        %1214 = vmatprep.subr.mxu0 %v1035
        %1215 = vmatpush1.msra.mxu0 %v1033
        %1216 = vmatprep.subr.mxu0 %v1039
        %1217 = vmatpush1.msra.mxu0 %v1037
        %1218 = vmatprep.subr.mxu0 %v1043
        %1219 = vmatpush1.msra.mxu0 %v1041
        %1220 = vmatprep.subr.mxu0 %v1047
        %1221 = vmatpush1.msra.mxu0 %v1045
        %1222 = vmatprep.subr.mxu0 %v1051
        %1223 = vmatpush1.msra.mxu0 %v1049
        %1224 = vmatprep.subr.mxu0 %v1055
        %1225 = vmatpush1.msra.mxu0 %v1053
        %1226 = vmatprep.subr.mxu0 %v1059
        %1227 = vmatpush1.msra.mxu0 %v1057
        %1228 = vmatprep.subr.mxu0 %v1063
        %1229 = vmatpush1.msra.mxu0 %v1061
        %1230 = vmatprep.subr.mxu0 %v1067
        %1231 = vmatpush1.msra.mxu0 %v1065
        %1232 = vmatprep.subr.mxu0 %v1071
        %1233 = vmatpush1.msra.mxu0 %v1069
        %1234 = vmatprep.subr.mxu0 %v1075
        %1235 = vmatpush1.msra.mxu0 %v1073
        %1236 = vmatprep.subr.mxu0 %v1079
        %1237 = vmatpush1.msra.mxu0 %v1077
        %1238 = vmatprep.subr.mxu0 %v1083
        %1239 = vmatpush1.msra.mxu0 %v1081
        %1240 = vmatprep.subr.mxu0 %v1087
        %1241 = vmatpush1.msra.mxu0 %v1085
        %1242 = vmatprep.subr.mxu0 %v1091
        %1243 = vmatpush1.msra.mxu0 %v1089
        %1244 = vmatprep.subr.mxu0 %v1095
        %1245 = vmatpush1.msra.mxu0 %v1093
        %1246 = vmatprep.subr.mxu0 %v1099
        %1247 = vmatpush1.msra.mxu0 %v1097
        %1248 = vmatprep.subr.mxu0 %v1103
        %1249 = vmatpush1.msra.mxu0 %v1101
        %1250 = vmatprep.subr.mxu0 %v1107
        %1251 = vmatpush1.msra.mxu0 %v1105
        %1252 = vmatprep.subr.mxu0 %v1111
        %1253 = vmatpush1.msra.mxu0 %v1109
        %1254 = vmatprep.subr.mxu0 %v1115
        %1255 = vmatpush1.msra.mxu0 %v1113
        %1256 = vmatprep.subr.mxu0 %v1119
        %1257 = vmatpush1.msra.mxu0 %v1117
        %1258 = vmatprep.mubr.f32.mxu0 %v461
        %1259 = vmatmul.mubr.f32.gmra.mrb[0].mxu0 %v460
        %v1260 = vpop.f32.mrb[0].mxu0
        %v1261 = vadd.f32 0.0, %v1260
        %v1262 = vpop.f32.mrb[0].mxu0
        %v1263 = vadd.f32 0.0, %v1262
        %1264 = vmatprep.mubr.f32.mxu0 %v463
        %1265 = vmatmul.mubr.f32.gmra.mrb[0].mxu0 %v462
        %v1266 = vpop.f32.mrb[0].mxu0
        %v1267 = vadd.f32 0.0, %v1266
        %v1268 = vpop.f32.mrb[0].mxu0
        %v1269 = vadd.f32 0.0, %v1268
        %1270 = vmatprep.mubr.f32.mxu0 %v465
        %1271 = vmatmul.mubr.f32.gmra.mrb[0].mxu0 %v464
        %v1272 = vpop.f32.mrb[0].mxu0
        %v1273 = vadd.f32 0.0, %v1272
        %v1274 = vpop.f32.mrb[0].mxu0
        %v1275 = vadd.f32 0.0, %v1274
        %1276 = vmatprep.mubr.f32.mxu0 %v467
        %1277 = vmatmul.mubr.f32.gmra.mrb[0].mxu0 %v466
        %v1278 = vpop.f32.mrb[0].mxu0
        %v1279 = vadd.f32 0.0, %v1278
        %v1280 = vpop.f32.mrb[0].mxu0
        %v1281 = vadd.f32 0.0, %v1280
        %1282 = vdwg.mxu0
        %v1283 = vrcp.pop %v1156
        %v1284 = vmul.f32 1.0, %v1283
        %v1285 = vrcp.pop %v1193
        %v1286 = vmul.f32 1.0, %v1285
        %v1287 = vmul.f32 %v1261, %v1284
        %v1288 = vmul.f32 %v1263, %v1286
        %v1289 = vmul.f32 %v1267, %v1284
        %v1290 = vmul.f32 %v1269, %v1286
        %v1291 = vmul.f32 %v1273, %v1284
        %v1292 = vmul.f32 %v1275, %v1286
        %v1293 = vmul.f32 %v1279, %v1284
        %v1294 = vmul.f32 %v1281, %v1286
        %1295 = vst [vmem:[%s175] sm:$0xff] %v1287
        %1296 = vst [vmem:[%s175 + $0x8] sm:$0xff] %v1288
        %1297 = vst [vmem:[%s175 + $0x10] sm:$0xff] %v1289
        %1298 = vst [vmem:[%s175 + $0x18] sm:$0xff] %v1290
        %1299 = vst [vmem:[%s175 + $0x20] sm:$0xff] %v1291
        %1300 = vst [vmem:[%s175 + $0x28] sm:$0xff] %v1292
        %1301 = vst [vmem:[%s175 + $0x30] sm:$0xff] %v1293
        %1302 = vst [vmem:[%s175 + $0x38] sm:$0xff] %v1294
        %s1303 = sand.u32 %s88, 1
        %s1304 = scalar_lea.sflag [#allocation6], %s1303
        %s1305 = sand.u32 %s88, 1
        %s1306 = smul.addr %s1305, 64
        %s1307 = scalar_lea.vmem [#allocation7], %s1306
        // Predicated region
        $region37: #{tpu_custom_call.1} parent=27 // pred_check
          %p1308 = pneg %p98
        $region38: #{tpu_custom_call.1} parent=27 // pred_check_branch
          %1310 = sbr.rel (%p1308) target = $region40
        $region39: #{tpu_custom_call.1} parent=27 // pred_region
          %s1311 = smul.u32 2, %s24
          %s1313 = ssub.s32 1024, 1024
          %1314 = vsyncadd %s1304, %s1313
          %s1315 = smul.addr %s23, 8
          %s1316 = sadd.s32 %s1311, %s1315
          %s1317 = smul.addr %s1316, 128
          %s1318 = scalar_lea.hbm %s2, %s1317
          %s1319 = sshll.u32 %s1307, 4
          %s1320 = int_to_ptr.vmem [resolvable:$true] %s1319
          %1325 = dma.vmem_to_hbm [thread:$0]  %s1320, 1024, %s1318, %s1304, 256, 256, 16
        $region40: #{tpu_custom_call.1} parent=27 // pred_fallthru
          _
      $region28: #{tpu_custom_call.1} parent=5 // pred_fallthru
        _
      %p1326 = scmp.le.s32.totalorder 2, %s14
      // Predicated region
      $region41: #{tpu_custom_call.1} parent=5 // pred_check
        %p1327 = pneg %p1326
      $region42: #{tpu_custom_call.1} parent=5 // pred_check_branch
        %1329 = sbr.rel (%p1327) target = $region44
      $region43: #{tpu_custom_call.1} parent=5 // pred_region
        %s1330 = ssub.s32 %s14, 2
        // Predicated region
        $region45: #{tpu_custom_call.1} parent=43 // pred_check
          %p1331 = pneg %p104
        $region46: #{tpu_custom_call.1} parent=43 // pred_check_branch
          %1333 = sbr.rel (%p1331) target = $region48
        $region47: #{tpu_custom_call.1} parent=43 // pred_region
          %s1334 = sand.u32 %s89, 1
          %s1335 = scalar_lea.sflag [#allocation6], %s1334
          %s1336 = sand.u32 %s89, 1
          %s1337 = smul.addr %s1336, 64
          %s1338 = scalar_lea.vmem [#allocation7], %s1337
          %1339 = dma.done %s1335, 1024
        $region48: #{tpu_custom_call.1} parent=43 // pred_fallthru
          _
      $region44: #{tpu_custom_call.1} parent=5 // pred_fallthru
        _
    $region6: #{tpu_custom_call.1} parent=1 // loop_footer
      %s18 = sadd.s32 1, %s14
    $region7: #{tpu_custom_call.1} parent=1 // loop_footer_branch
      %13 = sbr.rel target = $region3
    $region8: #{tpu_custom_call.1} parent=1 // loop_exit
      _
    %1340 = vsyncpa [#allocation5], 1
    %s1341 = scalar_lea.sflag [#allocation5], 1
    %1342 = vsyncpa %s1341, 1
    %1343 = vsyncpa [#allocation6], 1
    %s1344 = scalar_lea.sflag [#allocation6], 1
    %1345 = vsyncpa %s1344, 1

</llo_original>
